<compile_context>
chip_gen: v5e
topology: v5e:2x2
jax: 0.10.0
libtpu: 0.0.40
codegen_flags: <defaults>
</compile_context>

<pallas_src>
import functools

import jax
import jax.numpy as jnp
from jax.experimental import pallas as pl
from jax.experimental.pallas import tpu as pltpu


def pinn_kernel(x_ref, w1_ref, b1_ref, w2_ref, b2_ref, w3_ref, b3_ref, o_ref):
    # x_ref: (1, bn) lane-dense batch tile
    # w1/b1: (64, 1)   w2: (64, 64) [f32 or bf16]   b2: (64, 1)
    # w3:    (64, 1)   b3: (1, 1)
    x = x_ref[...]                                           # (1, bn) f32

    # fc1: degenerate (64,1)@(1,bn) -> pure VPU broadcast multiply-add.
    h1 = jnp.tanh(w1_ref[...] * x + b1_ref[...])             # (64, bn) f32

    # fc2: the only real matmul -> MXU.  Operand dtype follows w2 (bf16 by
    # default per perf review); accumulation stays f32.
    w2 = w2_ref[...]
    h2 = jnp.tanh(
        jnp.dot(w2, h1.astype(w2.dtype), preferred_element_type=jnp.float32)
        + b2_ref[...]
    )                                                        # (64, bn) f32

    # fc3: (1,64)@(64,bn) -> VPU multiply + sublane (XLU) reduce (MXU has
    # slack but XLU/VPU are not the binding slot here; EUP/tanh is).
    t = jnp.sum(w3_ref[...] * h2, axis=0, keepdims=True) + b3_ref[...]  # (1, bn)

    # Hard boundary-condition ansatz: t * (1 - x) * x + x  (lane-dense store).
    o_ref[...] = (t * (1.0 - x) * x + x).astype(o_ref.dtype)


def _round_up(x, m):
    return ((x + m - 1) // m) * m


def _choose_block_n(n, max_block_n=4096):
    """Large, overhead-amortizing tile; multiple of 256 (fills the 256-wide
    v6e/v7x MXU, 128-multiple for v5e); >= 2 tiles when there is enough work
    so the 'parallel' grid axis can shard across v7x's two TensorCores."""
    align = 512
    n_al = _round_up(max(n, 1), align)
    if n_al <= align:
        return align                       # tiny batch: one 512-lane tile
    if n_al <= 2 * max_block_n:
        return _round_up(n_al // 2, 256)   # exactly two tiles (v7x megacore)
    return max_block_n                     # many tiles of the max size


@functools.partial(jax.jit, static_argnames=("block_n",))
def pinn_forward_lane_dense(xt, w1c, b1c, w2c, b2c, w3c, b3c, *, block_n):
    """Lane-dense entry point: xt is (1, n_pad) f32 with n_pad % block_n == 0.
    Returns (1, n_pad).  No relayout/pad/slice plumbing (perf-review item)."""
    n_pad = xt.shape[1]
    assert n_pad % block_n == 0, (n_pad, block_n)
    grid = (n_pad // block_n,)

    full = lambda a: pl.BlockSpec(a.shape, lambda i: (0, 0))  # grid-invariant

    compiler_kwargs = {}
    if block_n > 4096:
        # f32 h1/h2 temporaries are 64*block_n*4 B each; leave generous
        # headroom (binding default is 16 MiB scoped VMEM on v5e), capped
        # safely below v7x's 64 MiB physical VMEM.
        compiler_kwargs["vmem_limit_bytes"] = min(
            48 << 20, 16 * 64 * block_n * 4 + (4 << 20)
        )

    return pl.pallas_call(
        pinn_kernel,
        out_shape=jax.ShapeDtypeStruct((1, n_pad), jnp.float32),
        grid_spec=pltpu.PrefetchScalarGridSpec(
            num_scalar_prefetch=0,
            grid=grid,
            in_specs=[
                pl.BlockSpec((1, block_n), lambda i: (0, i)),  # x tile (lanes)
                full(w1c), full(b1c),
                full(w2c), full(b2c),
                full(w3c), full(b3c),
            ],
            out_specs=pl.BlockSpec((1, block_n), lambda i: (0, i)),
        ),
        compiler_params=pltpu.CompilerParams(
            dimension_semantics=("parallel",),
            **compiler_kwargs,
        ),
    )(xt, w1c, b1c, w2c, b2c, w3c, b3c)


@functools.partial(
    jax.jit, static_argnames=("block_n", "max_block_n", "mxu_bf16")
)
def pinn_forward(x, w1, b1, w2, b2, w3, b3, *, block_n=None, max_block_n=4096,
                 mxu_bf16=True):
    """x: (N, 1) f32; weights in PyTorch layout:
    w1 (64,1), b1 (64,), w2 (64,64), b2 (64,), w3 (1,64), b3 (1,)."""
    n = x.shape[0]
    bn = _choose_block_n(n, max_block_n) if block_n is None else block_n
    n_pad = _round_up(n, bn)

    # Lane-dense layout: batch on the 128-lane axis; zero-pad ragged batches
    # (padded lanes produce finite values that are sliced away below).
    xt = x.astype(jnp.float32).reshape(1, n)
    if n_pad != n:
        xt = jnp.pad(xt, ((0, 0), (0, n_pad - n)))

    # Params in the transposed (hidden-on-sublane) kernel layout.
    w1c = w1.reshape(64, 1).astype(jnp.float32)
    b1c = b1.reshape(64, 1).astype(jnp.float32)
    w2c = w2.astype(jnp.bfloat16 if mxu_bf16 else jnp.float32)  # (64,64)
    b2c = b2.reshape(64, 1).astype(jnp.float32)
    w3c = w3.reshape(64, 1).astype(jnp.float32)
    b3c = b3.reshape(1, 1).astype(jnp.float32)

    out = pinn_forward_lane_dense(xt, w1c, b1c, w2c, b2c, w3c, b3c, block_n=bn)
    return out[:, :n].reshape(n, 1)


def reference_forward(x, w1, b1, w2, b2, w3, b3):
    h1 = jnp.tanh(x @ w1.T + b1)
    h2 = jnp.tanh(h1 @ w2.T + b2)
    t = h2 @ w3.T + b3
    return t * (1.0 - x) * x + x


def init_params(key):
    # Deterministic synthetic parameters in PyTorch nn.Linear layout.
    k1, k2, k3, k4, k5, k6 = jax.random.split(key, 6)
    w1 = jax.random.normal(k1, (64, 1), jnp.float32) * 0.5
    b1 = jax.random.normal(k2, (64,), jnp.float32) * 0.1
    w2 = jax.random.normal(k3, (64, 64), jnp.float32) * (1.0 / 8.0)
    b2 = jax.random.normal(k4, (64,), jnp.float32) * 0.1
    w3 = jax.random.normal(k5, (1, 64), jnp.float32) * (1.0 / 8.0)
    b3 = jax.random.normal(k6, (1,), jnp.float32) * 0.1
    return w1, b1, w2, b2, w3, b3


if __name__ == "__main__":
    key = jax.random.PRNGKey(0)
    k_params, k_x = jax.random.split(key)
    params = init_params(k_params)

    # --- aligned batch: auto tiling gives 2 "parallel" grid steps of 512 ---
    N = 1024
    x = jax.random.uniform(k_x, (N, 1), jnp.float32)
    ref = reference_forward(x, *params)

    # f32 MXU path: exact-semantics check against the PyTorch-equivalent math.
    out_f32 = jax.block_until_ready(pinn_forward(x, *params, mxu_bf16=False))
    assert out_f32.shape == (N, 1)
    assert jnp.allclose(out_f32, ref, atol=1e-5, rtol=1e-5), (
        f"f32 max abs err = {jnp.max(jnp.abs(out_f32 - ref))}"
    )

    # Default path: bf16 MXU operands, f32 accumulate (relaxed tolerance per
    # the performance review's correctness note).
    out_bf16 = jax.block_until_ready(pinn_forward(x, *params))
    assert jnp.allclose(out_bf16, ref, atol=2e-2, rtol=2e-2), (
        f"bf16 max abs err = {jnp.max(jnp.abs(out_bf16 - ref))}"
    )

    # --- ragged batch exercises the zero-padding path (single 512 tile) ---
    N2 = 300
    x2 = jax.random.uniform(jax.random.PRNGKey(7), (N2, 1), jnp.float32)
    out2 = jax.block_until_ready(pinn_forward(x2, *params, mxu_bf16=False))
    ref2 = reference_forward(x2, *params)
    assert out2.shape == (N2, 1)
    assert jnp.allclose(out2, ref2, atol=1e-5, rtol=1e-5), (
        f"ragged max abs err = {jnp.max(jnp.abs(out2 - ref2))}"
    )

    # --- larger collocation batch: multi-tile path with 4096-wide tiles ---
    N3 = 20000
    x3 = jax.random.uniform(jax.random.PRNGKey(11), (N3, 1), jnp.float32)
    out3 = jax.block_until_ready(pinn_forward(x3, *params))
    ref3 = reference_forward(x3, *params)
    assert out3.shape == (N3, 1)
    assert jnp.allclose(out3, ref3, atol=2e-2, rtol=2e-2), (
        f"large-batch max abs err = {jnp.max(jnp.abs(out3 - ref3))}"
    )

    print("KERNEL_OK")
</pallas_src>

<mosaic_0001>
module attributes {stable_mosaic.version = 11 : i64} {
  func.func @pinn_kernel(%arg0: i32, %arg1: memref<1x512xf32, #tpu.memory_space<vmem>>, %arg2: memref<64x1xf32, #tpu.memory_space<vmem>>, %arg3: memref<64x1xf32, #tpu.memory_space<vmem>>, %arg4: memref<64x64xf32, #tpu.memory_space<vmem>>, %arg5: memref<64x1xf32, #tpu.memory_space<vmem>>, %arg6: memref<64x1xf32, #tpu.memory_space<vmem>>, %arg7: memref<1x1xf32, #tpu.memory_space<vmem>>, %arg8: memref<1x512xf32, #tpu.memory_space<vmem>>) attributes {dimension_semantics = [#tpu.dimension_semantics<parallel>], iteration_bounds = array<i64: 2>, scalar_prefetch = 0 : i64, scratch_operands = 0 : i64, tpu.core_type = #tpu.core_type<tc>, window_params = [{transform_indices = @transform_0, window_bounds = array<i64: 1, 512>}, {pipeline_mode = #tpu.pipeline_mode<synchronous>, transform_indices = @transform_1, window_bounds = array<i64: 64, 1>}, {pipeline_mode = #tpu.pipeline_mode<synchronous>, transform_indices = @transform_2, window_bounds = array<i64: 64, 1>}, {pipeline_mode = #tpu.pipeline_mode<synchronous>, transform_indices = @transform_3, window_bounds = array<i64: 64, 64>}, {pipeline_mode = #tpu.pipeline_mode<synchronous>, transform_indices = @transform_4, window_bounds = array<i64: 64, 1>}, {pipeline_mode = #tpu.pipeline_mode<synchronous>, transform_indices = @transform_5, window_bounds = array<i64: 64, 1>}, {pipeline_mode = #tpu.pipeline_mode<synchronous>, transform_indices = @transform_6, window_bounds = array<i64: 1, 1>}, {transform_indices = @transform_7, window_bounds = array<i64: 1, 512>}]} {
    %c0 = arith.constant 0 : index
    %c0_0 = arith.constant 0 : index
    %0 = vector.load %arg1[%c0, %c0_0] : memref<1x512xf32, #tpu.memory_space<vmem>>, vector<1x512xf32>
    %c0_1 = arith.constant 0 : index
    %c0_2 = arith.constant 0 : index
    %1 = vector.load %arg2[%c0_1, %c0_2] : memref<64x1xf32, #tpu.memory_space<vmem>>, vector<64x1xf32>
    %2 = vector.broadcast %1 : vector<64x1xf32> to vector<64x512xf32>
    %3 = vector.broadcast %0 : vector<1x512xf32> to vector<64x512xf32>
    %4 = arith.mulf %2, %3 : vector<64x512xf32>
    %c0_3 = arith.constant 0 : index
    %c0_4 = arith.constant 0 : index
    %5 = vector.load %arg3[%c0_3, %c0_4] : memref<64x1xf32, #tpu.memory_space<vmem>>, vector<64x1xf32>
    %6 = vector.broadcast %5 : vector<64x1xf32> to vector<64x512xf32>
    %7 = arith.addf %4, %6 : vector<64x512xf32>
    %8 = math.tanh %7 : vector<64x512xf32>
    %c0_5 = arith.constant 0 : index
    %c0_6 = arith.constant 0 : index
    %9 = vector.load %arg4[%c0_5, %c0_6] : memref<64x64xf32, #tpu.memory_space<vmem>>, vector<64x64xf32>
    %cst = arith.constant dense<0.000000e+00> : vector<64x512xf32>
    %10 = tpu.matmul %9, %8, %cst {dimension_numbers = #tpu.dot_dimension_numbers<[1], [0], [0], [1], [0, 0, 1, 1], [], []>} : vector<64x64xf32>, vector<64x512xf32>, vector<64x512xf32> -> vector<64x512xf32>
    %c0_7 = arith.constant 0 : index
    %c0_8 = arith.constant 0 : index
    %11 = vector.load %arg5[%c0_7, %c0_8] : memref<64x1xf32, #tpu.memory_space<vmem>>, vector<64x1xf32>
    %12 = vector.broadcast %11 : vector<64x1xf32> to vector<64x512xf32>
    %13 = arith.addf %10, %12 : vector<64x512xf32>
    %14 = math.tanh %13 : vector<64x512xf32>
    %c0_9 = arith.constant 0 : index
    %c0_10 = arith.constant 0 : index
    %15 = vector.load %arg6[%c0_9, %c0_10] : memref<64x1xf32, #tpu.memory_space<vmem>>, vector<64x1xf32>
    %16 = vector.broadcast %15 : vector<64x1xf32> to vector<64x512xf32>
    %17 = arith.mulf %16, %14 : vector<64x512xf32>
    %cst_11 = arith.constant dense<0.000000e+00> : vector<512xf32>
    %18 = vector.multi_reduction <add>, %17, %cst_11 [0] : vector<64x512xf32> to vector<512xf32>
    %19 = vector.shape_cast %18 : vector<512xf32> to vector<1x512xf32>
    %c0_12 = arith.constant 0 : index
    %c0_13 = arith.constant 0 : index
    %20 = vector.load %arg7[%c0_12, %c0_13] : memref<1x1xf32, #tpu.memory_space<vmem>>, vector<1x1xf32>
    %21 = vector.broadcast %20 : vector<1x1xf32> to vector<1x512xf32>
    %22 = arith.addf %19, %21 : vector<1x512xf32>
    %cst_14 = arith.constant 1.000000e+00 : f32
    %23 = vector.broadcast %cst_14 : f32 to vector<1x512xf32>
    %24 = arith.subf %23, %0 : vector<1x512xf32>
    %25 = arith.mulf %22, %24 : vector<1x512xf32>
    %26 = arith.mulf %25, %0 : vector<1x512xf32>
    %27 = arith.addf %26, %0 : vector<1x512xf32>
    %c0_15 = arith.constant 0 : index
    %c0_16 = arith.constant 0 : index
    %28 = vector.load %arg8[%c0_15, %c0_16] : memref<1x512xf32, #tpu.memory_space<vmem>>, vector<1x512xf32>
    tpu.vector_store %arg8[%c0_15, %c0_16], %27 {strides = array<i32>} : memref<1x512xf32, #tpu.memory_space<vmem>>, vector<1x512xf32>,
    return
  }
  func.func @transform_0(%arg0: i32) -> (i32, i32) {
    %c0_i32 = arith.constant 0 : i32
    %c0_i32_0 = arith.constant 0 : i32
    return %c0_i32, %arg0 : i32, i32
  }
  func.func @transform_1(%arg0: i32) -> (i32, i32) {
    %c0_i32 = arith.constant 0 : i32
    %c0_i32_0 = arith.constant 0 : i32
    %c0_i32_1 = arith.constant 0 : i32
    return %c0_i32, %c0_i32_0 : i32, i32
  }
  func.func @transform_2(%arg0: i32) -> (i32, i32) {
    %c0_i32 = arith.constant 0 : i32
    %c0_i32_0 = arith.constant 0 : i32
    %c0_i32_1 = arith.constant 0 : i32
    return %c0_i32, %c0_i32_0 : i32, i32
  }
  func.func @transform_3(%arg0: i32) -> (i32, i32) {
    %c0_i32 = arith.constant 0 : i32
    %c0_i32_0 = arith.constant 0 : i32
    %c0_i32_1 = arith.constant 0 : i32
    return %c0_i32, %c0_i32_0 : i32, i32
  }
  func.func @transform_4(%arg0: i32) -> (i32, i32) {
    %c0_i32 = arith.constant 0 : i32
    %c0_i32_0 = arith.constant 0 : i32
    %c0_i32_1 = arith.constant 0 : i32
    return %c0_i32, %c0_i32_0 : i32, i32
  }
  func.func @transform_5(%arg0: i32) -> (i32, i32) {
    %c0_i32 = arith.constant 0 : i32
    %c0_i32_0 = arith.constant 0 : i32
    %c0_i32_1 = arith.constant 0 : i32
    return %c0_i32, %c0_i32_0 : i32, i32
  }
  func.func @transform_6(%arg0: i32) -> (i32, i32) {
    %c0_i32 = arith.constant 0 : i32
    %c0_i32_0 = arith.constant 0 : i32
    %c0_i32_1 = arith.constant 0 : i32
    return %c0_i32, %c0_i32_0 : i32, i32
  }
  func.func @transform_7(%arg0: i32) -> (i32, i32) {
    %c0_i32 = arith.constant 0 : i32
    %c0_i32_0 = arith.constant 0 : i32
    return %c0_i32, %arg0 : i32, i32
  }
}

</mosaic_0001>

<llo_original>
// kernel: pinn_forward_lane_dense.1
$region0: #{pinn_forward_lane_dense.1}
  #allocation0 [shape = 'u32[]', space=smem, size = 0x4, offset = 0x4, fixed_abs, tag = 'smem constant byte address 0x4 - core index']
  #allocation1 [shape = 'u32[72,128]{1,0:T(1,128)}', space=vmem, size = 0x9000, scoped, tag = 'internal scratch']
  #allocation2 [shape = 'f32[1,1]{1,0:T(1,128)S(1)}', space=vmem, size = 0x200, scoped, tag = 'scoped memory for pinn_forward_lane_dense.1']
  %s0 = inlined_call_operand.vmem [shape: f32[1,1024], index: 0, kind: input, shape index: {}]
  %s1 = inlined_call_operand.vmem [shape: f32[64,1], index: 1, kind: input, shape index: {}]
  %s2 = inlined_call_operand.vmem [shape: f32[64,1], index: 2, kind: input, shape index: {}]
  %s3 = inlined_call_operand.vmem [shape: f32[64,64], index: 3, kind: input, shape index: {}]
  %s4 = inlined_call_operand.vmem [shape: f32[64,1], index: 4, kind: input, shape index: {}]
  %s5 = inlined_call_operand.vmem [shape: f32[64,1], index: 5, kind: input, shape index: {}]
  %s6 = inlined_call_operand.<no memory space> [shape: f32[1,1], index: 6, kind: input, shape index: {}]
  %s7 = inlined_call_operand.hbm [shape: f32[1,1024], index: 7, kind: output, shape index: {}]
  %s8 = sld [smem:[#allocation0]]
  $region61: #{pinn_forward_lane_dense.1} parent=0
    _
  %s10 = ssub.s32 1, %s8
  %s11 = scalar_select 0, %s10, %s8
  %v12 = vstv %s6
  %13 = vst [vmem:[#allocation2] sm:$0x1] %v12
  $region1: #{pinn_forward_lane_dense.1} parent=0
    #allocation3 [shape = 'u8[4096]{0}', space=vmem, size = 0x1000, scoped, tag = 'output window, operand 0']
    #allocation4 [shape = 's32[2]{0}', space=sflag, size = 0x8, scoped, tag = 'scoped memory for pinn_forward_lane_dense.1']
    %14 = vsyncpa [#allocation4], 0
    %s15 = scalar_lea.sflag [#allocation4], 1
    %16 = vsyncpa %s15, 0
    loop: start=0, step=1, limit=4
    $region2: #{pinn_forward_lane_dense.1} parent=1 // loop_pre_header
      _
    $region3: #{pinn_forward_lane_dense.1} parent=1 // loop_header
      %s18 = sphi 0, %s22
      %p19 = scmp.ge.s32.totalorder %s18, 4
      %s28 = sphi 0, %s30
      %s31 = sphi 0, %s28
      %s32 = sphi 0, %s31
      %s48 = sphi 0, %s32
      %s52 = sphi 0, %s52
      %s54 = sphi 0, %s52
      %s55 = sphi 0, %s54
      %s69 = sphi 0, %s55
      %s73 = sphi 0, %s73
      %s75 = sphi 0, %s73
      %s76 = sphi 0, %s75
      %s90 = sphi 0, %s76
      %s94 = sphi 0, %s94
      %s96 = sphi 0, %s94
      %s97 = sphi 0, %s96
      %s111 = sphi 0, %s97
      %s115 = sphi 0, %s115
      %s117 = sphi 0, %s115
      %s118 = sphi 0, %s117
      %s132 = sphi 0, %s118
      %s136 = sphi 0, %s136
      %s138 = sphi 0, %s136
      %s139 = sphi 0, %s138
      %s153 = sphi 0, %s139
      %s157 = sphi 0, %s157
      %s159 = sphi 0, %s157
      %s160 = sphi 0, %s159
      %s174 = sphi 0, %s160
      %s180 = sphi 0, %s182
      %s183 = sphi 0, %s180
      %s184 = sphi 0, %s183
      %s200 = sphi 0, %s184
    $region4: #{pinn_forward_lane_dense.1} parent=1 // loop_header_branch
      %21 = sbr.rel (%p19) target = $region8
    $region5: #{pinn_forward_lane_dense.1} parent=1 // loop_body
      %s23 = ssub.s32 %s18, 1
      %s24 = ssub.s32 %s18, 2
      %s25 = sadd.s32 %s18, 1
      %s26 = ssub.s32 %s18, %s25
      %p27 = scmp.eq.s32.totalorder %s26, 0
      %s29 = sadd.s32 %s28, 1
      %s30 = scalar_select %p27, %s28, %s29
      %p33 = pneg %p27
      %p34 = scmp.eq.s32.totalorder %s18, 1
      %p35 = por %p33, %p34
      %p36 = scmp.ne.s32.totalorder %s28, %s31
      %p37 = scmp.eq.s32.totalorder %s18, 0
      %p38 = por %p36, %p37
      %p39 = scmp.ne.s32.totalorder %s28, %s31
      %p40 = scmp.eq.s32.totalorder %s23, 1
      %p41 = por %p39, %p40
      %p42 = scmp.ne.s32.totalorder %s31, %s32
      %p43 = scmp.eq.s32.totalorder %s23, 0
      %p44 = por %p42, %p43
      %p45 = scmp.ne.s32.totalorder %s31, %s32
      %p46 = scmp.eq.s32.totalorder %s24, 1
      %p47 = por %p45, %p46
      %p49 = scmp.ne.s32.totalorder %s32, %s48
      %p50 = scmp.eq.s32.totalorder %s24, 0
      %p51 = por %p49, %p50
      %s53 = sadd.s32 %s52, 1
      %p56 = scmp.eq.s32.totalorder %s18, 1
      %p57 = scmp.ne.s32.totalorder %s52, %s54
      %p58 = scmp.eq.s32.totalorder %s18, 0
      %p59 = por %p57, %p58
      %p60 = scmp.ne.s32.totalorder %s52, %s54
      %p61 = scmp.eq.s32.totalorder %s23, 1
      %p62 = por %p60, %p61
      %p63 = scmp.ne.s32.totalorder %s54, %s55
      %p64 = scmp.eq.s32.totalorder %s23, 0
      %p65 = por %p63, %p64
      %p66 = scmp.ne.s32.totalorder %s54, %s55
      %p67 = scmp.eq.s32.totalorder %s24, 1
      %p68 = por %p66, %p67
      %p70 = scmp.ne.s32.totalorder %s55, %s69
      %p71 = scmp.eq.s32.totalorder %s24, 0
      %p72 = por %p70, %p71
      %s74 = sadd.s32 %s73, 1
      %p77 = scmp.eq.s32.totalorder %s18, 1
      %p78 = scmp.ne.s32.totalorder %s73, %s75
      %p79 = scmp.eq.s32.totalorder %s18, 0
      %p80 = por %p78, %p79
      %p81 = scmp.ne.s32.totalorder %s73, %s75
      %p82 = scmp.eq.s32.totalorder %s23, 1
      %p83 = por %p81, %p82
      %p84 = scmp.ne.s32.totalorder %s75, %s76
      %p85 = scmp.eq.s32.totalorder %s23, 0
      %p86 = por %p84, %p85
      %p87 = scmp.ne.s32.totalorder %s75, %s76
      %p88 = scmp.eq.s32.totalorder %s24, 1
      %p89 = por %p87, %p88
      %p91 = scmp.ne.s32.totalorder %s76, %s90
      %p92 = scmp.eq.s32.totalorder %s24, 0
      %p93 = por %p91, %p92
      %s95 = sadd.s32 %s94, 1
      %p98 = scmp.eq.s32.totalorder %s18, 1
      %p99 = scmp.ne.s32.totalorder %s94, %s96
      %p100 = scmp.eq.s32.totalorder %s18, 0
      %p101 = por %p99, %p100
      %p102 = scmp.ne.s32.totalorder %s94, %s96
      %p103 = scmp.eq.s32.totalorder %s23, 1
      %p104 = por %p102, %p103
      %p105 = scmp.ne.s32.totalorder %s96, %s97
      %p106 = scmp.eq.s32.totalorder %s23, 0
      %p107 = por %p105, %p106
      %p108 = scmp.ne.s32.totalorder %s96, %s97
      %p109 = scmp.eq.s32.totalorder %s24, 1
      %p110 = por %p108, %p109
      %p112 = scmp.ne.s32.totalorder %s97, %s111
      %p113 = scmp.eq.s32.totalorder %s24, 0
      %p114 = por %p112, %p113
      %s116 = sadd.s32 %s115, 1
      %p119 = scmp.eq.s32.totalorder %s18, 1
      %p120 = scmp.ne.s32.totalorder %s115, %s117
      %p121 = scmp.eq.s32.totalorder %s18, 0
      %p122 = por %p120, %p121
      %p123 = scmp.ne.s32.totalorder %s115, %s117
      %p124 = scmp.eq.s32.totalorder %s23, 1
      %p125 = por %p123, %p124
      %p126 = scmp.ne.s32.totalorder %s117, %s118
      %p127 = scmp.eq.s32.totalorder %s23, 0
      %p128 = por %p126, %p127
      %p129 = scmp.ne.s32.totalorder %s117, %s118
      %p130 = scmp.eq.s32.totalorder %s24, 1
      %p131 = por %p129, %p130
      %p133 = scmp.ne.s32.totalorder %s118, %s132
      %p134 = scmp.eq.s32.totalorder %s24, 0
      %p135 = por %p133, %p134
      %s137 = sadd.s32 %s136, 1
      %p140 = scmp.eq.s32.totalorder %s18, 1
      %p141 = scmp.ne.s32.totalorder %s136, %s138
      %p142 = scmp.eq.s32.totalorder %s18, 0
      %p143 = por %p141, %p142
      %p144 = scmp.ne.s32.totalorder %s136, %s138
      %p145 = scmp.eq.s32.totalorder %s23, 1
      %p146 = por %p144, %p145
      %p147 = scmp.ne.s32.totalorder %s138, %s139
      %p148 = scmp.eq.s32.totalorder %s23, 0
      %p149 = por %p147, %p148
      %p150 = scmp.ne.s32.totalorder %s138, %s139
      %p151 = scmp.eq.s32.totalorder %s24, 1
      %p152 = por %p150, %p151
      %p154 = scmp.ne.s32.totalorder %s139, %s153
      %p155 = scmp.eq.s32.totalorder %s24, 0
      %p156 = por %p154, %p155
      %s158 = sadd.s32 %s157, 1
      %p161 = scmp.eq.s32.totalorder %s18, 1
      %p162 = scmp.ne.s32.totalorder %s157, %s159
      %p163 = scmp.eq.s32.totalorder %s18, 0
      %p164 = por %p162, %p163
      %p165 = scmp.ne.s32.totalorder %s157, %s159
      %p166 = scmp.eq.s32.totalorder %s23, 1
      %p167 = por %p165, %p166
      %p168 = scmp.ne.s32.totalorder %s159, %s160
      %p169 = scmp.eq.s32.totalorder %s23, 0
      %p170 = por %p168, %p169
      %p171 = scmp.ne.s32.totalorder %s159, %s160
      %p172 = scmp.eq.s32.totalorder %s24, 1
      %p173 = por %p171, %p172
      %p175 = scmp.ne.s32.totalorder %s160, %s174
      %p176 = scmp.eq.s32.totalorder %s24, 0
      %p177 = por %p175, %p176
      %s178 = ssub.s32 %s18, %s25
      %p179 = scmp.eq.s32.totalorder %s178, 0
      %s181 = sadd.s32 %s180, 1
      %s182 = scalar_select %p179, %s180, %s181
      %p185 = pneg %p179
      %p186 = scmp.eq.s32.totalorder %s18, 1
      %p187 = por %p185, %p186
      %p188 = scmp.ne.s32.totalorder %s180, %s183
      %p189 = scmp.eq.s32.totalorder %s18, 0
      %p190 = por %p188, %p189
      %p191 = scmp.ne.s32.totalorder %s180, %s183
      %p192 = scmp.eq.s32.totalorder %s23, 1
      %p193 = por %p191, %p192
      %p194 = scmp.ne.s32.totalorder %s183, %s184
      %p195 = scmp.eq.s32.totalorder %s23, 0
      %p196 = por %p194, %p195
      %p197 = scmp.ne.s32.totalorder %s183, %s184
      %p198 = scmp.eq.s32.totalorder %s24, 1
      %p199 = por %p197, %p198
      %p201 = scmp.ne.s32.totalorder %s184, %s200
      %p202 = scmp.eq.s32.totalorder %s24, 0
      %p203 = por %p201, %p202
      %p204 = scmp.le.s32.totalorder 1, %s18
      %p205 = scmp.lt.s32.totalorder %s18, 3
      %p206 = pnand %p204, %p205
      %p207 = pneg %p206
      // Predicated region
      $region9: #{pinn_forward_lane_dense.1} parent=5 // pred_check
        _
      $region10: #{pinn_forward_lane_dense.1} parent=5 // pred_check_branch
        %209 = sbr.rel (%p206) target = $region12
      $region11: #{pinn_forward_lane_dense.1} parent=5 // pred_region
        %s210 = ssub.s32 %s18, 1
        // Predicated region
        $region13: #{pinn_forward_lane_dense.1} parent=11 // pred_check
          %p211 = pneg %p65
        $region14: #{pinn_forward_lane_dense.1} parent=11 // pred_check_branch
          %213 = sbr.rel (%p211) target = $region16
        $region15: #{pinn_forward_lane_dense.1} parent=11 // pred_region
          _
        $region16: #{pinn_forward_lane_dense.1} parent=11 // pred_fallthru
          _
        // Predicated region
        $region17: #{pinn_forward_lane_dense.1} parent=11 // pred_check
          %p214 = pneg %p86
        $region18: #{pinn_forward_lane_dense.1} parent=11 // pred_check_branch
          %216 = sbr.rel (%p214) target = $region20
        $region19: #{pinn_forward_lane_dense.1} parent=11 // pred_region
          _
        $region20: #{pinn_forward_lane_dense.1} parent=11 // pred_fallthru
          _
        // Predicated region
        $region21: #{pinn_forward_lane_dense.1} parent=11 // pred_check
          %p217 = pneg %p107
        $region22: #{pinn_forward_lane_dense.1} parent=11 // pred_check_branch
          %219 = sbr.rel (%p217) target = $region24
        $region23: #{pinn_forward_lane_dense.1} parent=11 // pred_region
          _
        $region24: #{pinn_forward_lane_dense.1} parent=11 // pred_fallthru
          _
        // Predicated region
        $region25: #{pinn_forward_lane_dense.1} parent=11 // pred_check
          %p220 = pneg %p128
        $region26: #{pinn_forward_lane_dense.1} parent=11 // pred_check_branch
          %222 = sbr.rel (%p220) target = $region28
        $region27: #{pinn_forward_lane_dense.1} parent=11 // pred_region
          _
        $region28: #{pinn_forward_lane_dense.1} parent=11 // pred_fallthru
          _
        // Predicated region
        $region29: #{pinn_forward_lane_dense.1} parent=11 // pred_check
          %p223 = pneg %p149
        $region30: #{pinn_forward_lane_dense.1} parent=11 // pred_check_branch
          %225 = sbr.rel (%p223) target = $region32
        $region31: #{pinn_forward_lane_dense.1} parent=11 // pred_region
          _
        $region32: #{pinn_forward_lane_dense.1} parent=11 // pred_fallthru
          _
        // Predicated region
        $region33: #{pinn_forward_lane_dense.1} parent=11 // pred_check
          %p226 = pneg %p170
        $region34: #{pinn_forward_lane_dense.1} parent=11 // pred_check_branch
          %228 = sbr.rel (%p226) target = $region36
        $region35: #{pinn_forward_lane_dense.1} parent=11 // pred_region
          _
        $region36: #{pinn_forward_lane_dense.1} parent=11 // pred_fallthru
          _
      $region12: #{pinn_forward_lane_dense.1} parent=5 // pred_fallthru
        _
      %p229 = scmp.lt.s32.totalorder %s18, 2
      // Predicated region
      $region37: #{pinn_forward_lane_dense.1} parent=5 // pred_check
        %p230 = pneg %p229
      $region38: #{pinn_forward_lane_dense.1} parent=5 // pred_check_branch
        %232 = sbr.rel (%p230) target = $region40
      $region39: #{pinn_forward_lane_dense.1} parent=5 // pred_region
        // Predicated region
        $region41: #{pinn_forward_lane_dense.1} parent=39 // pred_check
          %p233 = pneg %p38
        $region42: #{pinn_forward_lane_dense.1} parent=39 // pred_check_branch
          %235 = sbr.rel (%p233) target = $region44
        $region43: #{pinn_forward_lane_dense.1} parent=39 // pred_region
          %s236 = smul.u32 4, %s18
          %p237 = scmp.lt.s32.totalorder %s236, 7
          %s238 = scalar_select %p237, %s236, 7
          %s239 = scalar_lea.vmem %s0, %s238
          %s240 = smul.u32 4, %s18
        $region44: #{pinn_forward_lane_dense.1} parent=39 // pred_fallthru
          _
      $region40: #{pinn_forward_lane_dense.1} parent=5 // pred_fallthru
        _
      %p241 = scmp.le.s32.totalorder 1, %s18
      %p242 = scmp.lt.s32.totalorder %s18, 3
      %p243 = pnand %p241, %p242
      %p244 = pneg %p243
      // Predicated region
      $region45: #{pinn_forward_lane_dense.1} parent=5 // pred_check
        _
      $region46: #{pinn_forward_lane_dense.1} parent=5 // pred_check_branch
        %246 = sbr.rel (%p243) target = $region48
      $region47: #{pinn_forward_lane_dense.1} parent=5 // pred_region
        %s247 = ssub.s32 %s18, 1
        %s248 = smul.u32 4, %s23
        %p249 = scmp.lt.s32.totalorder %s248, 7
        %s250 = scalar_select %p249, %s248, 7
        %s251 = scalar_lea.vmem %s0, %s250
        %p252 = pneg %p44
        %p253 = pneg %p41
        %p254 = pneg %p65
        %p255 = pneg %p62
        %p256 = pneg %p86
        %p257 = pneg %p83
        %p258 = pneg %p107
        %p259 = pneg %p104
        %p260 = pneg %p128
        %p261 = pneg %p125
        %p262 = pneg %p149
        %p263 = pneg %p146
        %p264 = pneg %p170
        %p265 = pneg %p167
        %p266 = pneg %p196
        %p267 = pneg %p193
        %s268 = sand.u32 %s183, 1
        %s269 = scalar_lea.sflag [#allocation4], %s268
        %s270 = sand.u32 %s183, 1
        %s271 = smul.addr %s270, 4
        %s272 = scalar_lea.vmem [#allocation3], %s271
        %s273 = smul.u32 4, %s23
        %p274 = scmp.lt.s32.totalorder %s273, 7
        %s275 = scalar_select %p274, %s273, 7
        %s276 = scalar_lea.vmem %s0, %s275
        %s277 = smul.u32 4, %s23
        %s278 = smul.u32 4, %s23
        %v279 = vld [vmem:[%s276] sm:$0xf]
        %v280 = vld [vmem:[%s1] sm:$0xff]
        %v281 = vld [vmem:[%s1 + $0x8] sm:$0xff]
        %v282 = vld [vmem:[%s1 + $0x10] sm:$0xff]
        %v283 = vld [vmem:[%s1 + $0x18] sm:$0xff]
        %v284 = vld [vmem:[%s1 + $0x20] sm:$0xff]
        %v285 = vld [vmem:[%s1 + $0x28] sm:$0xff]
        %v286 = vld [vmem:[%s1 + $0x30] sm:$0xff]
        %v287 = vld [vmem:[%s1 + $0x38] sm:$0xff]
        %289 = vset.pattern.permute.xlu0 0
        %290 = vperm.xlu0 %289, %v280
        %v291 = vpop.permute.xlu0 %290
        %294 = vset.pattern.permute.xlu0 0
        %295 = vperm.xlu0 %294, %v281
        %v296 = vpop.permute.xlu0 %295
        %299 = vset.pattern.permute.xlu0 0
        %300 = vperm.xlu0 %299, %v282
        %v301 = vpop.permute.xlu0 %300
        %304 = vset.pattern.permute.xlu0 0
        %305 = vperm.xlu0 %304, %v283
        %v306 = vpop.permute.xlu0 %305
        %309 = vset.pattern.permute.xlu0 0
        %310 = vperm.xlu0 %309, %v284
        %v311 = vpop.permute.xlu0 %310
        %314 = vset.pattern.permute.xlu0 0
        %315 = vperm.xlu0 %314, %v285
        %v316 = vpop.permute.xlu0 %315
        %319 = vset.pattern.permute.xlu0 0
        %320 = vperm.xlu0 %319, %v286
        %v321 = vpop.permute.xlu0 %320
        %324 = vset.pattern.permute.xlu0 0
        %325 = vperm.xlu0 %324, %v287
        %v326 = vpop.permute.xlu0 %325
        %v329 = vperm.slane %v279, 0
        %v330 = vperm.slane %v279, 1
        %v331 = vperm.slane %v279, 2
        %v332 = vperm.slane %v279, 3
        %v337 = vmul.f32 %v291, %v329
        %v338 = vmul.f32 %v291, %v330
        %v339 = vmul.f32 %v291, %v331
        %v340 = vmul.f32 %v291, %v332
        %v341 = vmul.f32 %v296, %v329
        %v342 = vmul.f32 %v296, %v330
        %v343 = vmul.f32 %v296, %v331
        %v344 = vmul.f32 %v296, %v332
        %v345 = vmul.f32 %v301, %v329
        %v346 = vmul.f32 %v301, %v330
        %v347 = vmul.f32 %v301, %v331
        %v348 = vmul.f32 %v301, %v332
        %v349 = vmul.f32 %v306, %v329
        %v350 = vmul.f32 %v306, %v330
        %v351 = vmul.f32 %v306, %v331
        %v352 = vmul.f32 %v306, %v332
        %v353 = vmul.f32 %v311, %v329
        %v354 = vmul.f32 %v311, %v330
        %v355 = vmul.f32 %v311, %v331
        %v356 = vmul.f32 %v311, %v332
        %v357 = vmul.f32 %v316, %v329
        %v358 = vmul.f32 %v316, %v330
        %v359 = vmul.f32 %v316, %v331
        %v360 = vmul.f32 %v316, %v332
        %v361 = vmul.f32 %v321, %v329
        %v362 = vmul.f32 %v321, %v330
        %v363 = vmul.f32 %v321, %v331
        %v364 = vmul.f32 %v321, %v332
        %v365 = vmul.f32 %v326, %v329
        %v366 = vmul.f32 %v326, %v330
        %v367 = vmul.f32 %v326, %v331
        %v368 = vmul.f32 %v326, %v332
        %v369 = vld [vmem:[%s2] sm:$0xff]
        %v370 = vld [vmem:[%s2 + $0x8] sm:$0xff]
        %v371 = vld [vmem:[%s2 + $0x10] sm:$0xff]
        %v372 = vld [vmem:[%s2 + $0x18] sm:$0xff]
        %v373 = vld [vmem:[%s2 + $0x20] sm:$0xff]
        %v374 = vld [vmem:[%s2 + $0x28] sm:$0xff]
        %v375 = vld [vmem:[%s2 + $0x30] sm:$0xff]
        %v376 = vld [vmem:[%s2 + $0x38] sm:$0xff]
        %378 = vset.pattern.permute.xlu0 0
        %379 = vperm.xlu0 %378, %v369
        %v380 = vpop.permute.xlu0 %379
        %383 = vset.pattern.permute.xlu0 0
        %384 = vperm.xlu0 %383, %v370
        %v385 = vpop.permute.xlu0 %384
        %388 = vset.pattern.permute.xlu0 0
        %389 = vperm.xlu0 %388, %v371
        %v390 = vpop.permute.xlu0 %389
        %393 = vset.pattern.permute.xlu0 0
        %394 = vperm.xlu0 %393, %v372
        %v395 = vpop.permute.xlu0 %394
        %398 = vset.pattern.permute.xlu0 0
        %399 = vperm.xlu0 %398, %v373
        %v400 = vpop.permute.xlu0 %399
        %403 = vset.pattern.permute.xlu0 0
        %404 = vperm.xlu0 %403, %v374
        %v405 = vpop.permute.xlu0 %404
        %408 = vset.pattern.permute.xlu0 0
        %409 = vperm.xlu0 %408, %v375
        %v410 = vpop.permute.xlu0 %409
        %413 = vset.pattern.permute.xlu0 0
        %414 = vperm.xlu0 %413, %v376
        %v415 = vpop.permute.xlu0 %414
        %v417 = vadd.f32 %v337, %v380
        %v418 = vadd.f32 %v338, %v380
        %v419 = vadd.f32 %v339, %v380
        %v420 = vadd.f32 %v340, %v380
        %v421 = vadd.f32 %v341, %v385
        %v422 = vadd.f32 %v342, %v385
        %v423 = vadd.f32 %v343, %v385
        %v424 = vadd.f32 %v344, %v385
        %v425 = vadd.f32 %v345, %v390
        %v426 = vadd.f32 %v346, %v390
        %v427 = vadd.f32 %v347, %v390
        %v428 = vadd.f32 %v348, %v390
        %v429 = vadd.f32 %v349, %v395
        %v430 = vadd.f32 %v350, %v395
        %v431 = vadd.f32 %v351, %v395
        %v432 = vadd.f32 %v352, %v395
        %v433 = vadd.f32 %v353, %v400
        %v434 = vadd.f32 %v354, %v400
        %v435 = vadd.f32 %v355, %v400
        %v436 = vadd.f32 %v356, %v400
        %v437 = vadd.f32 %v357, %v405
        %v438 = vadd.f32 %v358, %v405
        %v439 = vadd.f32 %v359, %v405
        %v440 = vadd.f32 %v360, %v405
        %v441 = vadd.f32 %v361, %v410
        %v442 = vadd.f32 %v362, %v410
        %v443 = vadd.f32 %v363, %v410
        %v444 = vadd.f32 %v364, %v410
        %v445 = vadd.f32 %v365, %v415
        %v446 = vadd.f32 %v366, %v415
        %v447 = vadd.f32 %v367, %v415
        %v448 = vadd.f32 %v368, %v415
        %v449 = vtanh.pop %v417
        %v450 = vtanh.pop %v418
        %v451 = vtanh.pop %v419
        %v452 = vtanh.pop %v420
        %v453 = vtanh.pop %v421
        %v454 = vtanh.pop %v422
        %v455 = vtanh.pop %v423
        %v456 = vtanh.pop %v424
        %v457 = vtanh.pop %v425
        %v458 = vtanh.pop %v426
        %v459 = vtanh.pop %v427
        %v460 = vtanh.pop %v428
        %v461 = vtanh.pop %v429
        %v462 = vtanh.pop %v430
        %v463 = vtanh.pop %v431
        %v464 = vtanh.pop %v432
        %v465 = vtanh.pop %v433
        %v466 = vtanh.pop %v434
        %v467 = vtanh.pop %v435
        %v468 = vtanh.pop %v436
        %v469 = vtanh.pop %v437
        %v470 = vtanh.pop %v438
        %v471 = vtanh.pop %v439
        %v472 = vtanh.pop %v440
        %v473 = vtanh.pop %v441
        %v474 = vtanh.pop %v442
        %v475 = vtanh.pop %v443
        %v476 = vtanh.pop %v444
        %v477 = vtanh.pop %v445
        %v478 = vtanh.pop %v446
        %v479 = vtanh.pop %v447
        %v480 = vtanh.pop %v448
        %v481 = vld [vmem:[%s3] sm:$0xff]
        %v482 = vld [vmem:[%s3 + $0x8] sm:$0xff]
        %v483 = vld [vmem:[%s3 + $0x10] sm:$0xff]
        %v484 = vld [vmem:[%s3 + $0x18] sm:$0xff]
        %v485 = vld [vmem:[%s3 + $0x20] sm:$0xff]
        %v486 = vld [vmem:[%s3 + $0x28] sm:$0xff]
        %v487 = vld [vmem:[%s3 + $0x30] sm:$0xff]
        %v488 = vld [vmem:[%s3 + $0x38] sm:$0xff]
        %v489 = vld [vmem:[%s4] sm:$0xff]
        %v490 = vld [vmem:[%s4 + $0x8] sm:$0xff]
        %v491 = vld [vmem:[%s4 + $0x10] sm:$0xff]
        %v492 = vld [vmem:[%s4 + $0x18] sm:$0xff]
        %v493 = vld [vmem:[%s4 + $0x20] sm:$0xff]
        %v494 = vld [vmem:[%s4 + $0x28] sm:$0xff]
        %v495 = vld [vmem:[%s4 + $0x30] sm:$0xff]
        %v496 = vld [vmem:[%s4 + $0x38] sm:$0xff]
        %498 = vset.pattern.permute.xlu0 0
        %499 = vperm.xlu0 %498, %v489
        %v500 = vpop.permute.xlu0 %499
        %503 = vset.pattern.permute.xlu0 0
        %504 = vperm.xlu0 %503, %v490
        %v505 = vpop.permute.xlu0 %504
        %508 = vset.pattern.permute.xlu0 0
        %509 = vperm.xlu0 %508, %v491
        %v510 = vpop.permute.xlu0 %509
        %513 = vset.pattern.permute.xlu0 0
        %514 = vperm.xlu0 %513, %v492
        %v515 = vpop.permute.xlu0 %514
        %518 = vset.pattern.permute.xlu0 0
        %519 = vperm.xlu0 %518, %v493
        %v520 = vpop.permute.xlu0 %519
        %523 = vset.pattern.permute.xlu0 0
        %524 = vperm.xlu0 %523, %v494
        %v525 = vpop.permute.xlu0 %524
        %528 = vset.pattern.permute.xlu0 0
        %529 = vperm.xlu0 %528, %v495
        %v530 = vpop.permute.xlu0 %529
        %533 = vset.pattern.permute.xlu0 0
        %534 = vperm.xlu0 %533, %v496
        %v535 = vpop.permute.xlu0 %534
        %vm537 = vcmask 523264
        %v539 = vsel %vm537, %v481, 0
        %v542 = vsel %vm537, %v482, 0
        %v545 = vsel %vm537, %v483, 0
        %v548 = vsel %vm537, %v484, 0
        %v551 = vsel %vm537, %v485, 0
        %v554 = vsel %vm537, %v486, 0
        %v557 = vsel %vm537, %v487, 0
        %v560 = vsel %vm537, %v488, 0
        %562 = vmatpush.msra.mxu0 0.0
        %563 = vmatpush.msra.mxu0 0.0
        %564 = vmatpush.msra.mxu0 0.0
        %565 = vmatpush.msra.mxu0 0.0
        %566 = vmatpush.msra.mxu0 0.0
        %567 = vmatpush.msra.mxu0 0.0
        %568 = vmatpush.msra.mxu0 0.0
        %569 = vmatpush.msra.mxu0 0.0
        %570 = vmatpush.msra.mxu0 %v477
        %571 = vmatpush.msra.mxu0 %v473
        %572 = vmatpush.msra.mxu0 %v469
        %573 = vmatpush.msra.mxu0 %v465
        %574 = vmatpush.msra.mxu0 %v461
        %575 = vmatpush.msra.mxu0 %v457
        %576 = vmatpush.msra.mxu0 %v453
        %577 = vmatpush.msra.mxu0 %v449
        %578 = vmatmul.f32.gmra.mxu0 %v539
        %v579 = vpop.f32.mrf.mxu0
        %v580 = vadd.f32 %v500, %v579
        %581 = vmatmul.f32.gmra.mxu0 %v542
        %v582 = vpop.f32.mrf.mxu0
        %v583 = vadd.f32 %v505, %v582
        %584 = vmatmul.f32.gmra.mxu0 %v545
        %v585 = vpop.f32.mrf.mxu0
        %v586 = vadd.f32 %v510, %v585
        %587 = vmatmul.f32.gmra.mxu0 %v548
        %v588 = vpop.f32.mrf.mxu0
        %v589 = vadd.f32 %v515, %v588
        %590 = vmatmul.f32.gmra.mxu0 %v551
        %v591 = vpop.f32.mrf.mxu0
        %v592 = vadd.f32 %v520, %v591
        %593 = vmatmul.f32.gmra.mxu0 %v554
        %v594 = vpop.f32.mrf.mxu0
        %v595 = vadd.f32 %v525, %v594
        %596 = vmatmul.f32.gmra.mxu0 %v557
        %v597 = vpop.f32.mrf.mxu0
        %v598 = vadd.f32 %v530, %v597
        %599 = vmatmul.f32.gmra.mxu0 %v560
        %v600 = vpop.f32.mrf.mxu0
        %v601 = vadd.f32 %v535, %v600
        %602 = vdwg.mxu0
        %603 = vmatpush.msra.mxu0 0.0
        %604 = vmatpush.msra.mxu0 0.0
        %605 = vmatpush.msra.mxu0 0.0
        %606 = vmatpush.msra.mxu0 0.0
        %607 = vmatpush.msra.mxu0 0.0
        %608 = vmatpush.msra.mxu0 0.0
        %609 = vmatpush.msra.mxu0 0.0
        %610 = vmatpush.msra.mxu0 0.0
        %611 = vmatpush.msra.mxu0 %v478
        %612 = vmatpush.msra.mxu0 %v474
        %613 = vmatpush.msra.mxu0 %v470
        %614 = vmatpush.msra.mxu0 %v466
        %615 = vmatpush.msra.mxu0 %v462
        %616 = vmatpush.msra.mxu0 %v458
        %617 = vmatpush.msra.mxu0 %v454
        %618 = vmatpush.msra.mxu0 %v450
        %619 = vmatmul.f32.gmra.mxu0 %v539
        %v620 = vpop.f32.mrf.mxu0
        %v621 = vadd.f32 %v500, %v620
        %622 = vmatmul.f32.gmra.mxu0 %v542
        %v623 = vpop.f32.mrf.mxu0
        %v624 = vadd.f32 %v505, %v623
        %625 = vmatmul.f32.gmra.mxu0 %v545
        %v626 = vpop.f32.mrf.mxu0
        %v627 = vadd.f32 %v510, %v626
        %628 = vmatmul.f32.gmra.mxu0 %v548
        %v629 = vpop.f32.mrf.mxu0
        %v630 = vadd.f32 %v515, %v629
        %631 = vmatmul.f32.gmra.mxu0 %v551
        %v632 = vpop.f32.mrf.mxu0
        %v633 = vadd.f32 %v520, %v632
        %634 = vmatmul.f32.gmra.mxu0 %v554
        %v635 = vpop.f32.mrf.mxu0
        %v636 = vadd.f32 %v525, %v635
        %637 = vmatmul.f32.gmra.mxu0 %v557
        %v638 = vpop.f32.mrf.mxu0
        %v639 = vadd.f32 %v530, %v638
        %640 = vmatmul.f32.gmra.mxu0 %v560
        %v641 = vpop.f32.mrf.mxu0
        %v642 = vadd.f32 %v535, %v641
        %643 = vdwg.mxu0
        %644 = vmatpush.msra.mxu0 0.0
        %645 = vmatpush.msra.mxu0 0.0
        %646 = vmatpush.msra.mxu0 0.0
        %647 = vmatpush.msra.mxu0 0.0
        %648 = vmatpush.msra.mxu0 0.0
        %649 = vmatpush.msra.mxu0 0.0
        %650 = vmatpush.msra.mxu0 0.0
        %651 = vmatpush.msra.mxu0 0.0
        %652 = vmatpush.msra.mxu0 %v479
        %653 = vmatpush.msra.mxu0 %v475
        %654 = vmatpush.msra.mxu0 %v471
        %655 = vmatpush.msra.mxu0 %v467
        %656 = vmatpush.msra.mxu0 %v463
        %657 = vmatpush.msra.mxu0 %v459
        %658 = vmatpush.msra.mxu0 %v455
        %659 = vmatpush.msra.mxu0 %v451
        %660 = vmatmul.f32.gmra.mxu0 %v539
        %v661 = vpop.f32.mrf.mxu0
        %v662 = vadd.f32 %v500, %v661
        %663 = vmatmul.f32.gmra.mxu0 %v542
        %v664 = vpop.f32.mrf.mxu0
        %v665 = vadd.f32 %v505, %v664
        %666 = vmatmul.f32.gmra.mxu0 %v545
        %v667 = vpop.f32.mrf.mxu0
        %v668 = vadd.f32 %v510, %v667
        %669 = vmatmul.f32.gmra.mxu0 %v548
        %v670 = vpop.f32.mrf.mxu0
        %v671 = vadd.f32 %v515, %v670
        %672 = vmatmul.f32.gmra.mxu0 %v551
        %v673 = vpop.f32.mrf.mxu0
        %v674 = vadd.f32 %v520, %v673
        %675 = vmatmul.f32.gmra.mxu0 %v554
        %v676 = vpop.f32.mrf.mxu0
        %v677 = vadd.f32 %v525, %v676
        %678 = vmatmul.f32.gmra.mxu0 %v557
        %v679 = vpop.f32.mrf.mxu0
        %v680 = vadd.f32 %v530, %v679
        %681 = vmatmul.f32.gmra.mxu0 %v560
        %v682 = vpop.f32.mrf.mxu0
        %v683 = vadd.f32 %v535, %v682
        %684 = vdwg.mxu0
        %685 = vmatpush.msra.mxu0 0.0
        %686 = vmatpush.msra.mxu0 0.0
        %687 = vmatpush.msra.mxu0 0.0
        %688 = vmatpush.msra.mxu0 0.0
        %689 = vmatpush.msra.mxu0 0.0
        %690 = vmatpush.msra.mxu0 0.0
        %691 = vmatpush.msra.mxu0 0.0
        %692 = vmatpush.msra.mxu0 0.0
        %693 = vmatpush.msra.mxu0 %v480
        %694 = vmatpush.msra.mxu0 %v476
        %695 = vmatpush.msra.mxu0 %v472
        %696 = vmatpush.msra.mxu0 %v468
        %697 = vmatpush.msra.mxu0 %v464
        %698 = vmatpush.msra.mxu0 %v460
        %699 = vmatpush.msra.mxu0 %v456
        %700 = vmatpush.msra.mxu0 %v452
        %701 = vmatmul.f32.gmra.mxu0 %v539
        %v702 = vpop.f32.mrf.mxu0
        %v703 = vadd.f32 %v500, %v702
        %704 = vmatmul.f32.gmra.mxu0 %v542
        %v705 = vpop.f32.mrf.mxu0
        %v706 = vadd.f32 %v505, %v705
        %707 = vmatmul.f32.gmra.mxu0 %v545
        %v708 = vpop.f32.mrf.mxu0
        %v709 = vadd.f32 %v510, %v708
        %710 = vmatmul.f32.gmra.mxu0 %v548
        %v711 = vpop.f32.mrf.mxu0
        %v712 = vadd.f32 %v515, %v711
        %713 = vmatmul.f32.gmra.mxu0 %v551
        %v714 = vpop.f32.mrf.mxu0
        %v715 = vadd.f32 %v520, %v714
        %716 = vmatmul.f32.gmra.mxu0 %v554
        %v717 = vpop.f32.mrf.mxu0
        %v718 = vadd.f32 %v525, %v717
        %719 = vmatmul.f32.gmra.mxu0 %v557
        %v720 = vpop.f32.mrf.mxu0
        %v721 = vadd.f32 %v530, %v720
        %722 = vmatmul.f32.gmra.mxu0 %v560
        %v723 = vpop.f32.mrf.mxu0
        %v724 = vadd.f32 %v535, %v723
        %725 = vdwg.mxu0
        %v726 = vtanh.pop %v580
        %v727 = vtanh.pop %v621
        %v728 = vtanh.pop %v662
        %v729 = vtanh.pop %v703
        %v730 = vtanh.pop %v583
        %v731 = vtanh.pop %v624
        %v732 = vtanh.pop %v665
        %v733 = vtanh.pop %v706
        %v734 = vtanh.pop %v586
        %v735 = vtanh.pop %v627
        %v736 = vtanh.pop %v668
        %v737 = vtanh.pop %v709
        %v738 = vtanh.pop %v589
        %v739 = vtanh.pop %v630
        %v740 = vtanh.pop %v671
        %v741 = vtanh.pop %v712
        %v742 = vtanh.pop %v592
        %v743 = vtanh.pop %v633
        %v744 = vtanh.pop %v674
        %v745 = vtanh.pop %v715
        %v746 = vtanh.pop %v595
        %v747 = vtanh.pop %v636
        %v748 = vtanh.pop %v677
        %v749 = vtanh.pop %v718
        %v750 = vtanh.pop %v598
        %v751 = vtanh.pop %v639
        %v752 = vtanh.pop %v680
        %v753 = vtanh.pop %v721
        %v754 = vtanh.pop %v601
        %v755 = vtanh.pop %v642
        %v756 = vtanh.pop %v683
        %v757 = vtanh.pop %v724
        %v758 = vld [vmem:[%s5] sm:$0xff]
        %v759 = vld [vmem:[%s5 + $0x8] sm:$0xff]
        %v760 = vld [vmem:[%s5 + $0x10] sm:$0xff]
        %v761 = vld [vmem:[%s5 + $0x18] sm:$0xff]
        %v762 = vld [vmem:[%s5 + $0x20] sm:$0xff]
        %v763 = vld [vmem:[%s5 + $0x28] sm:$0xff]
        %v764 = vld [vmem:[%s5 + $0x30] sm:$0xff]
        %v765 = vld [vmem:[%s5 + $0x38] sm:$0xff]
        %767 = vset.pattern.permute.xlu0 0
        %768 = vperm.xlu0 %767, %v758
        %v769 = vpop.permute.xlu0 %768
        %772 = vset.pattern.permute.xlu0 0
        %773 = vperm.xlu0 %772, %v759
        %v774 = vpop.permute.xlu0 %773
        %777 = vset.pattern.permute.xlu0 0
        %778 = vperm.xlu0 %777, %v760
        %v779 = vpop.permute.xlu0 %778
        %782 = vset.pattern.permute.xlu0 0
        %783 = vperm.xlu0 %782, %v761
        %v784 = vpop.permute.xlu0 %783
        %787 = vset.pattern.permute.xlu0 0
        %788 = vperm.xlu0 %787, %v762
        %v789 = vpop.permute.xlu0 %788
        %792 = vset.pattern.permute.xlu0 0
        %793 = vperm.xlu0 %792, %v763
        %v794 = vpop.permute.xlu0 %793
        %797 = vset.pattern.permute.xlu0 0
        %798 = vperm.xlu0 %797, %v764
        %v799 = vpop.permute.xlu0 %798
        %802 = vset.pattern.permute.xlu0 0
        %803 = vperm.xlu0 %802, %v765
        %v804 = vpop.permute.xlu0 %803
        %v806 = vmul.f32 %v769, %v726
        %v807 = vmul.f32 %v769, %v727
        %v808 = vmul.f32 %v769, %v728
        %v809 = vmul.f32 %v769, %v729
        %v810 = vmul.f32 %v774, %v730
        %v811 = vmul.f32 %v774, %v731
        %v812 = vmul.f32 %v774, %v732
        %v813 = vmul.f32 %v774, %v733
        %v814 = vmul.f32 %v779, %v734
        %v815 = vmul.f32 %v779, %v735
        %v816 = vmul.f32 %v779, %v736
        %v817 = vmul.f32 %v779, %v737
        %v818 = vmul.f32 %v784, %v738
        %v819 = vmul.f32 %v784, %v739
        %v820 = vmul.f32 %v784, %v740
        %v821 = vmul.f32 %v784, %v741
        %v822 = vmul.f32 %v789, %v742
        %v823 = vmul.f32 %v789, %v743
        %v824 = vmul.f32 %v789, %v744
        %v825 = vmul.f32 %v789, %v745
        %v826 = vmul.f32 %v794, %v746
        %v827 = vmul.f32 %v794, %v747
        %v828 = vmul.f32 %v794, %v748
        %v829 = vmul.f32 %v794, %v749
        %v830 = vmul.f32 %v799, %v750
        %v831 = vmul.f32 %v799, %v751
        %v832 = vmul.f32 %v799, %v752
        %v833 = vmul.f32 %v799, %v753
        %v834 = vmul.f32 %v804, %v754
        %v835 = vmul.f32 %v804, %v755
        %v836 = vmul.f32 %v804, %v756
        %v837 = vmul.f32 %v804, %v757
        %v838 = vadd.f32 %v806, %v810
        %v839 = vadd.f32 %v838, %v814
        %v840 = vadd.f32 %v839, %v818
        %v841 = vadd.f32 %v840, %v822
        %v842 = vadd.f32 %v841, %v826
        %v843 = vadd.f32 %v842, %v830
        %v844 = vadd.f32 %v843, %v834
        %v845 = vrot.slane %v844, 4
        %v846 = vadd.f32 %v844, %v845
        %v847 = vrot.slane %v846, 2
        %v848 = vadd.f32 %v846, %v847
        %v849 = vrot.slane %v848, 1
        %v850 = vadd.f32 %v848, %v849
        %v851 = vadd.f32 %v807, %v811
        %v852 = vadd.f32 %v851, %v815
        %v853 = vadd.f32 %v852, %v819
        %v854 = vadd.f32 %v853, %v823
        %v855 = vadd.f32 %v854, %v827
        %v856 = vadd.f32 %v855, %v831
        %v857 = vadd.f32 %v856, %v835
        %v858 = vrot.slane %v857, 4
        %v859 = vadd.f32 %v857, %v858
        %v860 = vrot.slane %v859, 2
        %v861 = vadd.f32 %v859, %v860
        %v862 = vrot.slane %v861, 1
        %v863 = vadd.f32 %v861, %v862
        %v864 = vadd.f32 %v808, %v812
        %v865 = vadd.f32 %v864, %v816
        %v866 = vadd.f32 %v865, %v820
        %v867 = vadd.f32 %v866, %v824
        %v868 = vadd.f32 %v867, %v828
        %v869 = vadd.f32 %v868, %v832
        %v870 = vadd.f32 %v869, %v836
        %v871 = vrot.slane %v870, 4
        %v872 = vadd.f32 %v870, %v871
        %v873 = vrot.slane %v872, 2
        %v874 = vadd.f32 %v872, %v873
        %v875 = vrot.slane %v874, 1
        %v876 = vadd.f32 %v874, %v875
        %v877 = vadd.f32 %v809, %v813
        %v878 = vadd.f32 %v877, %v817
        %v879 = vadd.f32 %v878, %v821
        %v880 = vadd.f32 %v879, %v825
        %v881 = vadd.f32 %v880, %v829
        %v882 = vadd.f32 %v881, %v833
        %v883 = vadd.f32 %v882, %v837
        %v884 = vrot.slane %v883, 4
        %v885 = vadd.f32 %v883, %v884
        %v886 = vrot.slane %v885, 2
        %v887 = vadd.f32 %v885, %v886
        %v888 = vrot.slane %v887, 1
        %v889 = vadd.f32 %v887, %v888
        %v890 = vld [vmem:[#allocation2] sm:$0x1]
        %892 = vset.pattern.permute.xlu0 0
        %893 = vperm.xlu0 %892, %v890
        %v894 = vpop.permute.xlu0 %893
        %v896 = vperm.slane %v894, 0
        %v897 = vadd.f32 %v850, %v896
        %v898 = vadd.f32 %v863, %v896
        %v899 = vadd.f32 %v876, %v896
        %v900 = vadd.f32 %v889, %v896
        %v901 = vsub.f32 1.0, %v279
        %v903 = vperm.slane %v901, 0
        %v904 = vperm.slane %v901, 1
        %v905 = vperm.slane %v901, 2
        %v906 = vperm.slane %v901, 3
        %v911 = vmul.f32 %v897, %v903
        %v912 = vmul.f32 %v898, %v904
        %v913 = vmul.f32 %v899, %v905
        %v914 = vmul.f32 %v900, %v906
        %v915 = vmul.f32 %v911, %v329
        %v916 = vmul.f32 %v912, %v330
        %v917 = vmul.f32 %v913, %v331
        %v918 = vmul.f32 %v914, %v332
        %v919 = vadd.f32 %v915, %v329
        %v920 = vadd.f32 %v916, %v330
        %v921 = vadd.f32 %v917, %v331
        %v922 = vadd.f32 %v918, %v332
        %v927 = vrot.slane %v920, 7
        %v928 = vrot.slane %v921, 6
        %v929 = vrot.slane %v922, 5
        %vm930 = vcmask 1040384
        %v931 = vsel %vm930, %v919, %v927
        %vm932 = vcmask 1042434
        %v933 = vsel %vm932, %v928, %v929
        %vm934 = vcmask 1041408
        %v935 = vsel %vm934, %v931, %v933
        %v937 = vlaneseq
        %vm938 = vcmp.ge.s32.totalorder %v937, 0
        %vm939 = vcmp.lt.s32.totalorder %v937, 512
        %vm940 = vmand %vm938, %vm939
        %941 = vst.msk [vmem:[%s272] sm:$0xf] %vm940, %v935
        %s942 = sand.u32 %s183, 1
        %s943 = scalar_lea.sflag [#allocation4], %s942
        %s944 = sand.u32 %s183, 1
        %s945 = smul.addr %s944, 4
        %s946 = scalar_lea.vmem [#allocation3], %s945
        // Predicated region
        $region49: #{pinn_forward_lane_dense.1} parent=47 // pred_check
          %p947 = pneg %p193
        $region50: #{pinn_forward_lane_dense.1} parent=47 // pred_check_branch
          %949 = sbr.rel (%p947) target = $region52
        $region51: #{pinn_forward_lane_dense.1} parent=47 // pred_region
          %s950 = smul.u32 4, %s23
          %952 = vsyncadd %s943, 0
          %s953 = scalar_lea.hbm %s7, %s950
          %s955 = sshll.u32 %s946, 4
          %s956 = int_to_ptr.vmem [resolvable:$true] %s955
          %s957 = sshll.u32 %s953, 4
          %s958 = int_to_ptr.hbm [resolvable:$true] %s957
          %960 = dma.vmem_to_hbm [thread:$0]  %s956, 64, %s958, %s943
        $region52: #{pinn_forward_lane_dense.1} parent=47 // pred_fallthru
          _
      $region48: #{pinn_forward_lane_dense.1} parent=5 // pred_fallthru
        _
      %p961 = scmp.le.s32.totalorder 2, %s18
      // Predicated region
      $region53: #{pinn_forward_lane_dense.1} parent=5 // pred_check
        %p962 = pneg %p961
      $region54: #{pinn_forward_lane_dense.1} parent=5 // pred_check_branch
        %964 = sbr.rel (%p962) target = $region56
      $region55: #{pinn_forward_lane_dense.1} parent=5 // pred_region
        %s965 = ssub.s32 %s18, 2
        // Predicated region
        $region57: #{pinn_forward_lane_dense.1} parent=55 // pred_check
          %p966 = pneg %p199
        $region58: #{pinn_forward_lane_dense.1} parent=55 // pred_check_branch
          %968 = sbr.rel (%p966) target = $region60
        $region59: #{pinn_forward_lane_dense.1} parent=55 // pred_region
          %s969 = sand.u32 %s184, 1
          %s970 = scalar_lea.sflag [#allocation4], %s969
          %s971 = sand.u32 %s184, 1
          %s972 = smul.addr %s971, 4
          %s973 = scalar_lea.vmem [#allocation3], %s972
          %975 = dma.done %s970, 64
        $region60: #{pinn_forward_lane_dense.1} parent=55 // pred_fallthru
          _
      $region56: #{pinn_forward_lane_dense.1} parent=5 // pred_fallthru
        _
    $region6: #{pinn_forward_lane_dense.1} parent=1 // loop_footer
      %s22 = sadd.s32 1, %s18
    $region7: #{pinn_forward_lane_dense.1} parent=1 // loop_footer_branch
      %17 = sbr.rel target = $region3
    $region8: #{pinn_forward_lane_dense.1} parent=1 // loop_exit
      _
    %976 = vsyncpa [#allocation4], 1
    %s977 = scalar_lea.sflag [#allocation4], 1
    %978 = vsyncpa %s977, 1

</llo_original>
